<compile_context>
chip_gen: v5e
topology: v5e:2x2
jax: 0.10.0
libtpu: 0.0.40
codegen_flags: <defaults>
</compile_context>

<pallas_src>
import math
from functools import partial

import jax
import jax.numpy as jnp
import numpy as np
from jax.experimental import pallas as pl
from jax.experimental.pallas import tpu as pltpu


# ----------------------------------------------------------------------------
# In-kernel helpers
# ----------------------------------------------------------------------------
def _ln_relu(x, gamma, beta, eps=1e-5):
    """Single-pass LayerNorm over the last axis (f32 math), then ReLU."""
    h = x.shape[-1]
    s = jnp.sum(x, axis=-1, keepdims=True)
    ss = jnp.sum(x * x, axis=-1, keepdims=True)
    mu = s * (1.0 / h)
    var = ss * (1.0 / h) - mu * mu
    y = (x - mu) * jax.lax.rsqrt(var + eps) * gamma + beta
    return jnp.maximum(y, 0.0)


def _make_hypernet_kernel(L, mm_dtype):
    """Build the kernel; L = number of hidden (H,H) blocks, mm_dtype = dot operand dtype."""

    def kernel(*refs):
        if L > 0:
            (feats_ref, labels_ref, bm_ref, wf_ref, wl_ref, ln_ref, wh_ref,
             whead_ref, haff_ref, out_ref) = refs
        else:
            (feats_ref, labels_ref, bm_ref, wf_ref, wl_ref, ln_ref,
             whead_ref, haff_ref, out_ref) = refs
            wh_ref = None

        feats = feats_ref[...].astype(jnp.float32)        # [TB, NK*D]

        # --- F.normalize(feats, p=2, dim=1) per support example --------------
        # Sum-of-squares of each D-block of the flattened row, broadcast back to
        # every column of the block via the precomputed block-diagonal ones
        # matrix (one small MXU pass; avoids an unsupported lane-dim reshape).
        sumsq = jnp.dot(feats * feats, bm_ref[...],
                        preferred_element_type=jnp.float32)
        # rsqrt(max(sumsq, 1e-24)) == 1 / max(sqrt(sumsq), 1e-12) (F.normalize eps)
        feats_n = feats * jax.lax.rsqrt(jnp.maximum(sumsq, 1e-24))

        # --- first Linear: one matmul per operand group ------------------------
        h = jnp.dot(feats_n.astype(mm_dtype), wf_ref[...],
                    preferred_element_type=jnp.float32)
        h = h + jnp.dot(labels_ref[...], wl_ref[...],
                        preferred_element_type=jnp.float32)
        h = h + ln_ref[0:1, :]                               # b0
        h = _ln_relu(h, ln_ref[1:2, :], ln_ref[2:3, :])      # LayerNorm + ReLU

        # --- hidden blocks: Linear(H,H) + LayerNorm + ReLU ----------------------
        for i in range(L):  # static unroll (L is small)
            z = jnp.dot(h.astype(mm_dtype), wh_ref[i],
                        preferred_element_type=jnp.float32)
            z = z + ln_ref[3 + 3 * i:4 + 3 * i, :]
            h = _ln_relu(z,
                         ln_ref[4 + 3 * i:5 + 3 * i, :],
                         ln_ref[5 + 3 * i:6 + 3 * i, :])

        # --- fused heads: one [H, 128] matmul + per-column affine sigmoid -------
        logits = jnp.dot(h.astype(mm_dtype), whead_ref[...],
                         preferred_element_type=jnp.float32)
        logits = logits + haff_ref[0:1, :]                   # packed head biases
        out = haff_ref[2:3, :] + haff_ref[1:2, :] * jax.nn.sigmoid(logits)
        out_ref[...] = out.astype(out_ref.dtype)             # lane-dense (TB, 128) store

    return kernel


# ----------------------------------------------------------------------------
# Wrappers (parameter packing + pallas_call)
# ----------------------------------------------------------------------------
def _pick_tb(B):
    """Batch tile: fill the MXU sublane dim; keep >=2 grid steps once B can split
    so v7x's two TensorCores both get work (harmless on v5e/v6e)."""
    if B <= 128:
        return B
    tb = min(512, pl.cdiv(B, 2))
    return ((tb + 7) // 8) * 8          # sublane-aligned


@partial(jax.jit, static_argnames=("matmul_dtype",))
def hypernet_forward_batched(feats, labels_onehot, params, matmul_dtype=jnp.float32):
    """feats [B, NK, D], labels_onehot [B, NK, N_way] -> (ell [B,D], sf [B,1], sn [B,1]).

    matmul_dtype=jnp.bfloat16 uses bf16 dot operands with f32 accumulation
    (recommended on v6e/v7x); keep the default f32 on v5e.
    """
    B, NK, D = feats.shape
    N_way = labels_onehot.shape[-1]
    H = params["Wf"].shape[-1]
    L = params["Wh"].shape[0]
    NKD = NK * D
    DO = D + 2
    DO_pad = pl.cdiv(DO, 128) * 128     # lane-dense output slab (unmasked stores)
    mmdt = matmul_dtype

    # ---- pack parameters (constant-folded by jit) ----------------------------
    Wf2d = params["Wf"].reshape(NKD, H).astype(mmdt)
    Wl2d = params["Wl"].reshape(NK * N_way, H).astype(mmdt)
    ln_rows = [params["b0"], params["g0"], params["be0"]]
    for i in range(L):
        ln_rows += [params["bh"][i], params["gh"][i], params["beh"][i]]
    ln_pack = jnp.concatenate(ln_rows, axis=0).astype(jnp.float32)            # [3+3L, H]

    Whead = jnp.concatenate([params["Well"], params["Wsf"], params["Wsn"]], 1)  # [H, D+2]
    Whead = jnp.pad(Whead, ((0, 0), (0, DO_pad - DO))).astype(mmdt)             # [H, DO_pad]
    bhead = jnp.concatenate([params["bell"], params["bsf"], params["bsn"]], 1)  # [1, D+2]
    scale = jnp.concatenate([jnp.full((1, D), 10.0, jnp.float32),
                             jnp.array([[2.0, 0.1]], jnp.float32)], axis=1)
    offset = jnp.concatenate([jnp.full((1, D), 0.1, jnp.float32),
                              jnp.array([[0.5, 0.001]], jnp.float32)], axis=1)
    haff = jnp.concatenate([bhead, scale, offset], axis=0)                      # [3, D+2]
    haff = jnp.pad(haff, ((0, 0), (0, DO_pad - DO)))   # padded cols: scale=offset=0 -> out 0

    # Block-diagonal ones matrix for the per-example sum of squares, hoisted out
    # of the kernel (constant operand, DMA'd once).
    # TODO(synk): for very large NK*D factor this into [NKD,NK] @ [NK,NKD].
    idx = np.arange(NKD) // D
    blockmat = jnp.asarray((idx[:, None] == idx[None, :]).astype(np.float32))   # [NKD, NKD]

    feats_flat = feats.reshape(B, NKD).astype(mmdt)
    labels_flat = labels_onehot.reshape(B, NK * N_way).astype(mmdt)

    # ---- batch tiling ---------------------------------------------------------
    TB = _pick_tb(B)
    B_pad = pl.cdiv(B, TB) * TB
    if B_pad != B:  # zero rows are harmless (0 * rsqrt(1e-24) = 0) and sliced off
        feats_flat = jnp.pad(feats_flat, ((0, B_pad - B), (0, 0)))
        labels_flat = jnp.pad(labels_flat, ((0, B_pad - B), (0, 0)))

    def bcast(shape):  # weight/constant blocks: full array, same block every step
        return pl.BlockSpec(shape, lambda i, _n=len(shape): (0,) * _n)

    in_specs = [
        pl.BlockSpec((TB, NKD), lambda i: (i, 0)),
        pl.BlockSpec((TB, NK * N_way), lambda i: (i, 0)),
        bcast((NKD, NKD)),
        bcast((NKD, H)),
        bcast((NK * N_way, H)),
        bcast((3 + 3 * L, H)),
    ]
    args = [feats_flat, labels_flat, blockmat, Wf2d, Wl2d, ln_pack]
    if L > 0:  # drop zero-sized hidden weights when there are no hidden blocks
        in_specs.append(bcast((L, H, H)))
        args.append(params["Wh"].astype(mmdt))
    in_specs += [bcast((H, DO_pad)), bcast((3, DO_pad))]
    args += [Whead, haff]

    out = pl.pallas_call(
        _make_hypernet_kernel(L, mmdt),
        grid=(B_pad // TB,),
        in_specs=in_specs,
        out_specs=pl.BlockSpec((TB, DO_pad), lambda i: (i, 0)),
        out_shape=jax.ShapeDtypeStruct((B_pad, DO_pad), jnp.float32),
        compiler_params=pltpu.CompilerParams(dimension_semantics=("parallel",)),
    )(*args)

    out = out[:B, :DO]
    return out[:, :D], out[:, D:D + 1], out[:, D + 1:DO]


def hypernet_forward(feats, labels_onehot, params):
    """Single-task forward matching the PyTorch module: returns (ell [D], sf [1], sn [1])."""
    ell, sf, sn = hypernet_forward_batched(feats[None], labels_onehot[None], params)
    return ell[0], sf[0], sn[0]


# ----------------------------------------------------------------------------
# Deterministic parameter construction (mirrors the PyTorch __init__ shapes).
# ----------------------------------------------------------------------------
def init_params(key, NK, D, H, n_hidden, N_way):
    I = NK * (D + N_way)
    L = n_hidden - 1
    ks = jax.random.split(key, 10)

    bound0 = 1.0 / math.sqrt(I)
    w0_t = jax.random.uniform(ks[0], (I, H), jnp.float32, -bound0, bound0)  # Linear(I,H)^T
    b0 = jax.random.uniform(ks[1], (1, H), jnp.float32, -bound0, bound0)
    # reorder first-layer weights to match the per-example [feats | labels] flatten order
    w0_r = w0_t.reshape(NK, D + N_way, H)
    Wf = w0_r[:, :D, :]          # [NK, D, H]
    Wl = w0_r[:, D:, :]          # [NK, N_way, H]

    boundH = 1.0 / math.sqrt(H)
    Wh = jax.random.uniform(ks[2], (max(L, 1), H, H), jnp.float32, -boundH, boundH)[:L]
    bh = jax.random.uniform(ks[3], (max(L, 1), 1, H), jnp.float32, -boundH, boundH)[:L]
    gh = jnp.ones((L, 1, H), jnp.float32)
    beh = jnp.zeros((L, 1, H), jnp.float32)

    return dict(
        Wf=Wf, Wl=Wl, b0=b0,
        g0=jnp.ones((1, H), jnp.float32), be0=jnp.zeros((1, H), jnp.float32),
        Wh=Wh, bh=bh, gh=gh, beh=beh,
        Well=0.01 * jax.random.normal(ks[4], (H, D), jnp.float32),
        bell=jnp.zeros((1, D), jnp.float32),
        Wsf=0.01 * jax.random.normal(ks[5], (H, 1), jnp.float32),
        bsf=jnp.zeros((1, 1), jnp.float32),
        Wsn=0.01 * jax.random.normal(ks[6], (H, 1), jnp.float32),
        bsn=jnp.full((1, 1), -3.0, jnp.float32),
    )


# ----------------------------------------------------------------------------
# Pure-JAX reference (mirrors the PyTorch math exactly, for sanity check).
# ----------------------------------------------------------------------------
def hypernet_reference(feats, labels_onehot, params):
    def layernorm(x, gamma, beta, eps=1e-5):
        mu = jnp.mean(x, axis=-1, keepdims=True)
        var = jnp.mean((x - mu) * (x - mu), axis=-1, keepdims=True)
        return (x - mu) * jax.lax.rsqrt(var + eps) * gamma + beta

    NK, D = feats.shape
    norm = jnp.sqrt(jnp.sum(feats * feats, axis=1, keepdims=True))
    fn = feats / jnp.maximum(norm, 1e-12)
    inp = jnp.concatenate([fn, labels_onehot], axis=1).reshape(1, -1)
    W0 = jnp.concatenate([params["Wf"], params["Wl"]], axis=1).reshape(inp.shape[1], -1)
    h = inp @ W0 + params["b0"]
    h = jnp.maximum(layernorm(h, params["g0"], params["be0"]), 0.0)
    for i in range(params["Wh"].shape[0]):
        z = h @ params["Wh"][i] + params["bh"][i]
        h = jnp.maximum(layernorm(z, params["gh"][i], params["beh"][i]), 0.0)
    ell = 0.1 + 10.0 * jax.nn.sigmoid(h @ params["Well"] + params["bell"])
    sf = 0.5 + 2.0 * jax.nn.sigmoid(h @ params["Wsf"] + params["bsf"])
    sn = 0.001 + 0.1 * jax.nn.sigmoid(h @ params["Wsn"] + params["bsn"])
    return ell.reshape(-1), sf.reshape(-1), sn.reshape(-1)


if __name__ == "__main__":
    # 4-way, 2-shot few-shot task sizes.
    N_way, K_shot = 4, 2
    NK = N_way * K_shot          # 8 support examples
    D = 16                       # embedding dim
    H = 32                       # hypernet hidden width
    n_hidden = 2                 # one input block + one hidden block (L = 1)

    key = jax.random.PRNGKey(0)
    k_feat, k_param, k_batch, k_big = jax.random.split(key, 4)

    feats = jax.random.normal(k_feat, (NK, D), jnp.float32)
    label_idx = jnp.arange(NK) % N_way
    labels_onehot = jax.nn.one_hot(label_idx, N_way, dtype=jnp.float32)

    params = init_params(k_param, NK, D, H, n_hidden, N_way)
    ref_batched = jax.vmap(hypernet_reference, in_axes=(0, 0, None))

    # --- single task (matches the PyTorch module exactly) --------------------
    ell, sf, sn = hypernet_forward(feats, labels_onehot, params)
    jax.block_until_ready((ell, sf, sn))
    assert ell.shape == (D,) and sf.shape == (1,) and sn.shape == (1,)
    ell_r, sf_r, sn_r = hypernet_reference(feats, labels_onehot, params)
    np.testing.assert_allclose(np.asarray(ell), np.asarray(ell_r), rtol=1e-3, atol=1e-3)
    np.testing.assert_allclose(np.asarray(sf), np.asarray(sf_r), rtol=1e-3, atol=1e-3)
    np.testing.assert_allclose(np.asarray(sn), np.asarray(sn_r), rtol=1e-3, atol=1e-3)

    # --- small batch (single grid step, TB = B) -------------------------------
    B = 8
    feats_b = jax.random.normal(k_batch, (B, NK, D), jnp.float32)
    labels_b = jnp.broadcast_to(labels_onehot, (B, NK, N_way))
    ell_b, sf_b, sn_b = hypernet_forward_batched(feats_b, labels_b, params)
    jax.block_until_ready((ell_b, sf_b, sn_b))
    ell_br, sf_br, sn_br = ref_batched(feats_b, labels_b, params)
    np.testing.assert_allclose(np.asarray(ell_b), np.asarray(ell_br), rtol=1e-3, atol=1e-3)
    np.testing.assert_allclose(np.asarray(sf_b), np.asarray(sf_br), rtol=1e-3, atol=1e-3)
    np.testing.assert_allclose(np.asarray(sn_b), np.asarray(sn_br), rtol=1e-3, atol=1e-3)

    # --- large batch (TB > 128, multi-step "parallel" grid) --------------------
    B2 = 384
    feats_b2 = jax.random.normal(k_big, (B2, NK, D), jnp.float32)
    labels_b2 = jnp.broadcast_to(labels_onehot, (B2, NK, N_way))
    ell_b2, sf_b2, sn_b2 = hypernet_forward_batched(feats_b2, labels_b2, params)
    jax.block_until_ready((ell_b2, sf_b2, sn_b2))
    ell_b2r, sf_b2r, sn_b2r = ref_batched(feats_b2, labels_b2, params)
    np.testing.assert_allclose(np.asarray(ell_b2), np.asarray(ell_b2r), rtol=1e-3, atol=1e-3)
    np.testing.assert_allclose(np.asarray(sf_b2), np.asarray(sf_b2r), rtol=1e-3, atol=1e-3)
    np.testing.assert_allclose(np.asarray(sn_b2), np.asarray(sn_b2r), rtol=1e-3, atol=1e-3)

    # --- bf16 matmul-operand path (v6e/v7x byte-level win), loose tolerance ----
    ell_h, sf_h, sn_h = hypernet_forward_batched(
        feats_b2, labels_b2, params, matmul_dtype=jnp.bfloat16)
    jax.block_until_ready((ell_h, sf_h, sn_h))
    np.testing.assert_allclose(np.asarray(ell_h), np.asarray(ell_b2r), rtol=5e-2, atol=5e-2)
    np.testing.assert_allclose(np.asarray(sf_h), np.asarray(sf_b2r), rtol=5e-2, atol=5e-2)
    np.testing.assert_allclose(np.asarray(sn_h), np.asarray(sn_b2r), rtol=5e-2, atol=5e-2)

    # --- n_hidden = 1 (no hidden blocks): zero-sized Wh is dropped from the call
    params0 = init_params(k_param, NK, D, H, 1, N_way)
    ell0, sf0, sn0 = hypernet_forward(feats, labels_onehot, params0)
    jax.block_until_ready((ell0, sf0, sn0))
    ell0_r, sf0_r, sn0_r = hypernet_reference(feats, labels_onehot, params0)
    np.testing.assert_allclose(np.asarray(ell0), np.asarray(ell0_r), rtol=1e-3, atol=1e-3)
    np.testing.assert_allclose(np.asarray(sf0), np.asarray(sf0_r), rtol=1e-3, atol=1e-3)
    np.testing.assert_allclose(np.asarray(sn0), np.asarray(sn0_r), rtol=1e-3, atol=1e-3)

    print("KERNEL_OK")
</pallas_src>

<mosaic_0001>
module attributes {stable_mosaic.version = 11 : i64} {
  func.func @kernel(%arg0: i32, %arg1: memref<1x128xf32, #tpu.memory_space<vmem>>, %arg2: memref<1x32xf32, #tpu.memory_space<vmem>>, %arg3: memref<128x128xf32, #tpu.memory_space<vmem>>, %arg4: memref<128x32xf32, #tpu.memory_space<vmem>>, %arg5: memref<32x32xf32, #tpu.memory_space<vmem>>, %arg6: memref<6x32xf32, #tpu.memory_space<vmem>>, %arg7: memref<1x32x32xf32, #tpu.memory_space<vmem>>, %arg8: memref<32x128xf32, #tpu.memory_space<vmem>>, %arg9: memref<3x128xf32, #tpu.memory_space<vmem>>, %arg10: memref<1x128xf32, #tpu.memory_space<vmem>>) attributes {dimension_semantics = [#tpu.dimension_semantics<parallel>], iteration_bounds = array<i64: 1>, scalar_prefetch = 0 : i64, scratch_operands = 0 : i64, tpu.core_type = #tpu.core_type<tc>, window_params = [{transform_indices = @transform_0, window_bounds = array<i64: 1, 128>}, {transform_indices = @transform_1, window_bounds = array<i64: 1, 32>}, {pipeline_mode = #tpu.pipeline_mode<synchronous>, transform_indices = @transform_2, window_bounds = array<i64: 128, 128>}, {pipeline_mode = #tpu.pipeline_mode<synchronous>, transform_indices = @transform_3, window_bounds = array<i64: 128, 32>}, {pipeline_mode = #tpu.pipeline_mode<synchronous>, transform_indices = @transform_4, window_bounds = array<i64: 32, 32>}, {pipeline_mode = #tpu.pipeline_mode<synchronous>, transform_indices = @transform_5, window_bounds = array<i64: 6, 32>}, {pipeline_mode = #tpu.pipeline_mode<synchronous>, transform_indices = @transform_6, window_bounds = array<i64: 1, 32, 32>}, {pipeline_mode = #tpu.pipeline_mode<synchronous>, transform_indices = @transform_7, window_bounds = array<i64: 32, 128>}, {pipeline_mode = #tpu.pipeline_mode<synchronous>, transform_indices = @transform_8, window_bounds = array<i64: 3, 128>}, {transform_indices = @transform_9, window_bounds = array<i64: 1, 128>}]} {
    %c0 = arith.constant 0 : index
    %c0_0 = arith.constant 0 : index
    %0 = vector.load %arg1[%c0, %c0_0] : memref<1x128xf32, #tpu.memory_space<vmem>>, vector<1x128xf32>
    %1 = arith.mulf %0, %0 : vector<1x128xf32>
    %c0_1 = arith.constant 0 : index
    %c0_2 = arith.constant 0 : index
    %2 = vector.load %arg3[%c0_1, %c0_2] : memref<128x128xf32, #tpu.memory_space<vmem>>, vector<128x128xf32>
    %cst = arith.constant dense<0.000000e+00> : vector<1x128xf32>
    %3 = tpu.matmul %1, %2, %cst {dimension_numbers = #tpu.dot_dimension_numbers<[1], [0], [0], [1], [0, 0, 1, 1], [], []>} : vector<1x128xf32>, vector<128x128xf32>, vector<1x128xf32> -> vector<1x128xf32>
    %cst_3 = arith.constant 1.000000e-24 : f32
    %4 = vector.broadcast %cst_3 : f32 to vector<1x128xf32>
    %5 = arith.maximumf %3, %4 : vector<1x128xf32>
    %6 = math.rsqrt %5 : vector<1x128xf32>
    %7 = arith.mulf %0, %6 : vector<1x128xf32>
    %c0_4 = arith.constant 0 : index
    %c0_5 = arith.constant 0 : index
    %8 = vector.load %arg4[%c0_4, %c0_5] : memref<128x32xf32, #tpu.memory_space<vmem>>, vector<128x32xf32>
    %cst_6 = arith.constant dense<0.000000e+00> : vector<1x32xf32>
    %9 = tpu.matmul %7, %8, %cst_6 {dimension_numbers = #tpu.dot_dimension_numbers<[1], [0], [0], [1], [0, 0, 1, 1], [], []>} : vector<1x128xf32>, vector<128x32xf32>, vector<1x32xf32> -> vector<1x32xf32>
    %c0_7 = arith.constant 0 : index
    %c0_8 = arith.constant 0 : index
    %10 = vector.load %arg2[%c0_7, %c0_8] : memref<1x32xf32, #tpu.memory_space<vmem>>, vector<1x32xf32>
    %c0_9 = arith.constant 0 : index
    %c0_10 = arith.constant 0 : index
    %11 = vector.load %arg5[%c0_9, %c0_10] : memref<32x32xf32, #tpu.memory_space<vmem>>, vector<32x32xf32>
    %cst_11 = arith.constant dense<0.000000e+00> : vector<1x32xf32>
    %12 = tpu.matmul %10, %11, %cst_11 {dimension_numbers = #tpu.dot_dimension_numbers<[1], [0], [0], [1], [0, 0, 1, 1], [], []>} : vector<1x32xf32>, vector<32x32xf32>, vector<1x32xf32> -> vector<1x32xf32>
    %13 = arith.addf %9, %12 : vector<1x32xf32>
    %c0_12 = arith.constant 0 : index
    %c0_13 = arith.constant 0 : index
    %14 = vector.load %arg6[%c0_12, %c0_13] : memref<6x32xf32, #tpu.memory_space<vmem>>, vector<1x32xf32>
    %15 = arith.addf %13, %14 : vector<1x32xf32>
    %c1 = arith.constant 1 : index
    %c0_14 = arith.constant 0 : index
    %16 = vector.load %arg6[%c1, %c0_14] : memref<6x32xf32, #tpu.memory_space<vmem>>, vector<1x32xf32>
    %c2 = arith.constant 2 : index
    %c0_15 = arith.constant 0 : index
    %17 = vector.load %arg6[%c2, %c0_15] : memref<6x32xf32, #tpu.memory_space<vmem>>, vector<1x32xf32>
    %cst_16 = arith.constant dense<0.000000e+00> : vector<1xf32>
    %18 = vector.multi_reduction <add>, %15, %cst_16 [1] : vector<1x32xf32> to vector<1xf32>
    %19 = vector.shape_cast %18 : vector<1xf32> to vector<1x1xf32>
    %20 = arith.mulf %15, %15 : vector<1x32xf32>
    %cst_17 = arith.constant dense<0.000000e+00> : vector<1xf32>
    %21 = vector.multi_reduction <add>, %20, %cst_17 [1] : vector<1x32xf32> to vector<1xf32>
    %22 = vector.shape_cast %21 : vector<1xf32> to vector<1x1xf32>
    %cst_18 = arith.constant 3.125000e-02 : f32
    %23 = vector.broadcast %cst_18 : f32 to vector<1x1xf32>
    %24 = arith.mulf %19, %23 : vector<1x1xf32>
    %cst_19 = arith.constant 3.125000e-02 : f32
    %25 = vector.broadcast %cst_19 : f32 to vector<1x1xf32>
    %26 = arith.mulf %22, %25 : vector<1x1xf32>
    %27 = arith.mulf %24, %24 : vector<1x1xf32>
    %28 = arith.subf %26, %27 : vector<1x1xf32>
    %29 = vector.broadcast %24 : vector<1x1xf32> to vector<1x32xf32>
    %30 = arith.subf %15, %29 : vector<1x32xf32>
    %cst_20 = arith.constant 9.99999974E-6 : f32
    %31 = vector.broadcast %cst_20 : f32 to vector<1x1xf32>
    %32 = arith.addf %28, %31 : vector<1x1xf32>
    %33 = math.rsqrt %32 : vector<1x1xf32>
    %34 = vector.broadcast %33 : vector<1x1xf32> to vector<1x32xf32>
    %35 = arith.mulf %30, %34 : vector<1x32xf32>
    %36 = arith.mulf %35, %16 : vector<1x32xf32>
    %37 = arith.addf %36, %17 : vector<1x32xf32>
    %cst_21 = arith.constant 0.000000e+00 : f32
    %38 = vector.broadcast %cst_21 : f32 to vector<1x32xf32>
    %39 = arith.maximumf %37, %38 : vector<1x32xf32>
    %c0_22 = arith.constant 0 : index
    %c0_23 = arith.constant 0 : index
    %c0_24 = arith.constant 0 : index
    %40 = vector.load %arg7[%c0_22, %c0_23, %c0_24] : memref<1x32x32xf32, #tpu.memory_space<vmem>>, vector<1x32x32xf32>
    %41 = vector.shape_cast %40 : vector<1x32x32xf32> to vector<32x32xf32>
    %cst_25 = arith.constant dense<0.000000e+00> : vector<1x32xf32>
    %42 = tpu.matmul %39, %41, %cst_25 {dimension_numbers = #tpu.dot_dimension_numbers<[1], [0], [0], [1], [0, 0, 1, 1], [], []>} : vector<1x32xf32>, vector<32x32xf32>, vector<1x32xf32> -> vector<1x32xf32>
    %c3 = arith.constant 3 : index
    %c0_26 = arith.constant 0 : index
    %43 = vector.load %arg6[%c3, %c0_26] : memref<6x32xf32, #tpu.memory_space<vmem>>, vector<1x32xf32>
    %44 = arith.addf %42, %43 : vector<1x32xf32>
    %c4 = arith.constant 4 : index
    %c0_27 = arith.constant 0 : index
    %45 = vector.load %arg6[%c4, %c0_27] : memref<6x32xf32, #tpu.memory_space<vmem>>, vector<1x32xf32>
    %c5 = arith.constant 5 : index
    %c0_28 = arith.constant 0 : index
    %46 = vector.load %arg6[%c5, %c0_28] : memref<6x32xf32, #tpu.memory_space<vmem>>, vector<1x32xf32>
    %cst_29 = arith.constant dense<0.000000e+00> : vector<1xf32>
    %47 = vector.multi_reduction <add>, %44, %cst_29 [1] : vector<1x32xf32> to vector<1xf32>
    %48 = vector.shape_cast %47 : vector<1xf32> to vector<1x1xf32>
    %49 = arith.mulf %44, %44 : vector<1x32xf32>
    %cst_30 = arith.constant dense<0.000000e+00> : vector<1xf32>
    %50 = vector.multi_reduction <add>, %49, %cst_30 [1] : vector<1x32xf32> to vector<1xf32>
    %51 = vector.shape_cast %50 : vector<1xf32> to vector<1x1xf32>
    %cst_31 = arith.constant 3.125000e-02 : f32
    %52 = vector.broadcast %cst_31 : f32 to vector<1x1xf32>
    %53 = arith.mulf %48, %52 : vector<1x1xf32>
    %cst_32 = arith.constant 3.125000e-02 : f32
    %54 = vector.broadcast %cst_32 : f32 to vector<1x1xf32>
    %55 = arith.mulf %51, %54 : vector<1x1xf32>
    %56 = arith.mulf %53, %53 : vector<1x1xf32>
    %57 = arith.subf %55, %56 : vector<1x1xf32>
    %58 = vector.broadcast %53 : vector<1x1xf32> to vector<1x32xf32>
    %59 = arith.subf %44, %58 : vector<1x32xf32>
    %cst_33 = arith.constant 9.99999974E-6 : f32
    %60 = vector.broadcast %cst_33 : f32 to vector<1x1xf32>
    %61 = arith.addf %57, %60 : vector<1x1xf32>
    %62 = math.rsqrt %61 : vector<1x1xf32>
    %63 = vector.broadcast %62 : vector<1x1xf32> to vector<1x32xf32>
    %64 = arith.mulf %59, %63 : vector<1x32xf32>
    %65 = arith.mulf %64, %45 : vector<1x32xf32>
    %66 = arith.addf %65, %46 : vector<1x32xf32>
    %cst_34 = arith.constant 0.000000e+00 : f32
    %67 = vector.broadcast %cst_34 : f32 to vector<1x32xf32>
    %68 = arith.maximumf %66, %67 : vector<1x32xf32>
    %c0_35 = arith.constant 0 : index
    %c0_36 = arith.constant 0 : index
    %69 = vector.load %arg8[%c0_35, %c0_36] : memref<32x128xf32, #tpu.memory_space<vmem>>, vector<32x128xf32>
    %cst_37 = arith.constant dense<0.000000e+00> : vector<1x128xf32>
    %70 = tpu.matmul %68, %69, %cst_37 {dimension_numbers = #tpu.dot_dimension_numbers<[1], [0], [0], [1], [0, 0, 1, 1], [], []>} : vector<1x32xf32>, vector<32x128xf32>, vector<1x128xf32> -> vector<1x128xf32>
    %c0_38 = arith.constant 0 : index
    %c0_39 = arith.constant 0 : index
    %71 = vector.load %arg9[%c0_38, %c0_39] : memref<3x128xf32, #tpu.memory_space<vmem>>, vector<1x128xf32>
    %72 = arith.addf %70, %71 : vector<1x128xf32>
    %c2_40 = arith.constant 2 : index
    %c0_41 = arith.constant 0 : index
    %73 = vector.load %arg9[%c2_40, %c0_41] : memref<3x128xf32, #tpu.memory_space<vmem>>, vector<1x128xf32>
    %c1_42 = arith.constant 1 : index
    %c0_43 = arith.constant 0 : index
    %74 = vector.load %arg9[%c1_42, %c0_43] : memref<3x128xf32, #tpu.memory_space<vmem>>, vector<1x128xf32>
    %75 = arith.negf %72 : vector<1x128xf32>
    %76 = math.exp %75 : vector<1x128xf32>
    %cst_44 = arith.constant 1.000000e+00 : f32
    %77 = vector.broadcast %cst_44 : f32 to vector<1x128xf32>
    %78 = arith.addf %77, %76 : vector<1x128xf32>
    %79 = arith.divf %77, %78 : vector<1x128xf32>
    %80 = arith.mulf %74, %79 : vector<1x128xf32>
    %81 = arith.addf %73, %80 : vector<1x128xf32>
    %c0_45 = arith.constant 0 : index
    %c0_46 = arith.constant 0 : index
    %82 = vector.load %arg10[%c0_45, %c0_46] : memref<1x128xf32, #tpu.memory_space<vmem>>, vector<1x128xf32>
    tpu.vector_store %arg10[%c0_45, %c0_46], %81 {strides = array<i32>} : memref<1x128xf32, #tpu.memory_space<vmem>>, vector<1x128xf32>,
    return
  }
  func.func @transform_0(%arg0: i32) -> (i32, i32) {
    %c0_i32 = arith.constant 0 : i32
    %c0_i32_0 = arith.constant 0 : i32
    return %arg0, %c0_i32 : i32, i32
  }
  func.func @transform_1(%arg0: i32) -> (i32, i32) {
    %c0_i32 = arith.constant 0 : i32
    %c0_i32_0 = arith.constant 0 : i32
    return %arg0, %c0_i32 : i32, i32
  }
  func.func @transform_2(%arg0: i32) -> (i32, i32) {
    %c0_i32 = arith.constant 0 : i32
    %c0_i32_0 = arith.constant 0 : i32
    %c0_i32_1 = arith.constant 0 : i32
    return %c0_i32, %c0_i32_0 : i32, i32
  }
  func.func @transform_3(%arg0: i32) -> (i32, i32) {
    %c0_i32 = arith.constant 0 : i32
    %c0_i32_0 = arith.constant 0 : i32
    %c0_i32_1 = arith.constant 0 : i32
    return %c0_i32, %c0_i32_0 : i32, i32
  }
  func.func @transform_4(%arg0: i32) -> (i32, i32) {
    %c0_i32 = arith.constant 0 : i32
    %c0_i32_0 = arith.constant 0 : i32
    %c0_i32_1 = arith.constant 0 : i32
    return %c0_i32, %c0_i32_0 : i32, i32
  }
  func.func @transform_5(%arg0: i32) -> (i32, i32) {
    %c0_i32 = arith.constant 0 : i32
    %c0_i32_0 = arith.constant 0 : i32
    %c0_i32_1 = arith.constant 0 : i32
    return %c0_i32, %c0_i32_0 : i32, i32
  }
  func.func @transform_6(%arg0: i32) -> (i32, i32, i32) {
    %c0_i32 = arith.constant 0 : i32
    %c0_i32_0 = arith.constant 0 : i32
    %c0_i32_1 = arith.constant 0 : i32
    %c0_i32_2 = arith.constant 0 : i32
    return %c0_i32, %c0_i32_0, %c0_i32_1 : i32, i32, i32
  }
  func.func @transform_7(%arg0: i32) -> (i32, i32) {
    %c0_i32 = arith.constant 0 : i32
    %c0_i32_0 = arith.constant 0 : i32
    %c0_i32_1 = arith.constant 0 : i32
    return %c0_i32, %c0_i32_0 : i32, i32
  }
  func.func @transform_8(%arg0: i32) -> (i32, i32) {
    %c0_i32 = arith.constant 0 : i32
    %c0_i32_0 = arith.constant 0 : i32
    %c0_i32_1 = arith.constant 0 : i32
    return %c0_i32, %c0_i32_0 : i32, i32
  }
  func.func @transform_9(%arg0: i32) -> (i32, i32) {
    %c0_i32 = arith.constant 0 : i32
    %c0_i32_0 = arith.constant 0 : i32
    return %arg0, %c0_i32 : i32, i32
  }
}

</mosaic_0001>

<llo_original>
// kernel: hypernet_forward_batched.1
$region0: #{hypernet_forward_batched.1}
  #allocation0 [shape = 'u32[]', space=smem, size = 0x4, offset = 0x4, fixed_abs, tag = 'smem constant byte address 0x4 - core index']
  #allocation1 [shape = 'u32[72,128]{1,0:T(1,128)}', space=vmem, size = 0x9000, scoped, tag = 'internal scratch']
  %s0 = inlined_call_operand.vmem [shape: f32[1,128], index: 0, kind: input, shape index: {}]
  %s1 = inlined_call_operand.vmem [shape: f32[1,32], index: 1, kind: input, shape index: {}]
  %s2 = inlined_call_operand.hbm [shape: f32[128,128], index: 2, kind: input, shape index: {}]
  %s3 = inlined_call_operand.vmem [shape: f32[128,32], index: 3, kind: input, shape index: {}]
  %s4 = inlined_call_operand.vmem [shape: f32[32,32], index: 4, kind: input, shape index: {}]
  %s5 = inlined_call_operand.vmem [shape: f32[6,32], index: 5, kind: input, shape index: {}]
  %s6 = inlined_call_operand.vmem [shape: f32[1,32,32], index: 6, kind: input, shape index: {}]
  %s7 = inlined_call_operand.vmem [shape: f32[32,128], index: 7, kind: input, shape index: {}]
  %s8 = inlined_call_operand.vmem [shape: f32[3,128], index: 8, kind: input, shape index: {}]
  %s9 = inlined_call_operand.vmem [shape: f32[1,128], index: 9, kind: output, shape index: {}]
  %s10 = sld [smem:[#allocation0]]
  $region50: #{hypernet_forward_batched.1} parent=0
    _
  %s12 = ssub.s32 1, %s10
  %s13 = scalar_select 0, %s12, %s10
  $region1: #{hypernet_forward_batched.1} parent=0
    #allocation2 [shape = 'u8[65536]{0}', space=vmem, size = 0x10000, scoped, tag = 'input window, operand 2, single buffered']
    #allocation3 [shape = 's32[1]{0}', space=sflag, size = 0x4, scoped, tag = 'scoped memory for hypernet_forward_batched.1']
    %14 = vsyncpa [#allocation3], 0
    // Predicated region
    $region2: #{hypernet_forward_batched.1} parent=1 // pred_check
      _
    $region3: #{hypernet_forward_batched.1} parent=1 // pred_check_branch
      %16 = sbr.rel (0) target = $region5
    $region4: #{hypernet_forward_batched.1} parent=1 // pred_region
      _
    $region5: #{hypernet_forward_batched.1} parent=1 // pred_fallthru
      _
    // Predicated region
    $region6: #{hypernet_forward_batched.1} parent=1 // pred_check
      _
    $region7: #{hypernet_forward_batched.1} parent=1 // pred_check_branch
      %18 = sbr.rel (0) target = $region9
    $region8: #{hypernet_forward_batched.1} parent=1 // pred_region
      _
    $region9: #{hypernet_forward_batched.1} parent=1 // pred_fallthru
      _
    // Predicated region
    $region10: #{hypernet_forward_batched.1} parent=1 // pred_check
      _
    $region11: #{hypernet_forward_batched.1} parent=1 // pred_check_branch
      %20 = sbr.rel (0) target = $region13
    $region12: #{hypernet_forward_batched.1} parent=1 // pred_region
      %22 = vsyncadd [#allocation3], 0
      %s23 = sshll.u32 %s2, 4
      %s24 = int_to_ptr.hbm [resolvable:$true] %s23
      %s25 = sshll.u32 [#allocation2], 4
      %s26 = int_to_ptr.vmem [resolvable:$true] %s25
      %31 = dma.hbm_to_vmem [thread:$0]  %s24, 2048, %s26, [#allocation3], 128, 128, 8
    $region13: #{hypernet_forward_batched.1} parent=1 // pred_fallthru
      _
    // Predicated region
    $region14: #{hypernet_forward_batched.1} parent=1 // pred_check
      _
    $region15: #{hypernet_forward_batched.1} parent=1 // pred_check_branch
      %33 = sbr.rel (0) target = $region17
    $region16: #{hypernet_forward_batched.1} parent=1 // pred_region
      _
    $region17: #{hypernet_forward_batched.1} parent=1 // pred_fallthru
      _
    // Predicated region
    $region18: #{hypernet_forward_batched.1} parent=1 // pred_check
      _
    $region19: #{hypernet_forward_batched.1} parent=1 // pred_check_branch
      %35 = sbr.rel (0) target = $region21
    $region20: #{hypernet_forward_batched.1} parent=1 // pred_region
      _
    $region21: #{hypernet_forward_batched.1} parent=1 // pred_fallthru
      _
    // Predicated region
    $region22: #{hypernet_forward_batched.1} parent=1 // pred_check
      _
    $region23: #{hypernet_forward_batched.1} parent=1 // pred_check_branch
      %37 = sbr.rel (0) target = $region25
    $region24: #{hypernet_forward_batched.1} parent=1 // pred_region
      _
    $region25: #{hypernet_forward_batched.1} parent=1 // pred_fallthru
      _
    // Predicated region
    $region26: #{hypernet_forward_batched.1} parent=1 // pred_check
      _
    $region27: #{hypernet_forward_batched.1} parent=1 // pred_check_branch
      %39 = sbr.rel (0) target = $region29
    $region28: #{hypernet_forward_batched.1} parent=1 // pred_region
      _
    $region29: #{hypernet_forward_batched.1} parent=1 // pred_fallthru
      _
    // Predicated region
    $region30: #{hypernet_forward_batched.1} parent=1 // pred_check
      _
    $region31: #{hypernet_forward_batched.1} parent=1 // pred_check_branch
      %41 = sbr.rel (0) target = $region33
    $region32: #{hypernet_forward_batched.1} parent=1 // pred_region
      _
    $region33: #{hypernet_forward_batched.1} parent=1 // pred_fallthru
      _
    // Predicated region
    $region34: #{hypernet_forward_batched.1} parent=1 // pred_check
      _
    $region35: #{hypernet_forward_batched.1} parent=1 // pred_check_branch
      %43 = sbr.rel (0) target = $region37
    $region36: #{hypernet_forward_batched.1} parent=1 // pred_region
      _
    $region37: #{hypernet_forward_batched.1} parent=1 // pred_fallthru
      _
    // Predicated region
    $region38: #{hypernet_forward_batched.1} parent=1 // pred_check
      _
    $region39: #{hypernet_forward_batched.1} parent=1 // pred_check_branch
      %45 = sbr.rel (0) target = $region41
    $region40: #{hypernet_forward_batched.1} parent=1 // pred_region
      %47 = dma.done [#allocation3], 2048
    $region41: #{hypernet_forward_batched.1} parent=1 // pred_fallthru
      _
    %v48 = vld [vmem:[%s0] sm:$0x1]
    %v49 = vmul.f32 %v48, %v48
    %v50 = vld [vmem:[#allocation2] sm:$0xff]
    %v51 = vld [vmem:[#allocation2 + $0x8] sm:$0xff]
    %v52 = vld [vmem:[#allocation2 + $0x10] sm:$0xff]
    %v53 = vld [vmem:[#allocation2 + $0x18] sm:$0xff]
    %v54 = vld [vmem:[#allocation2 + $0x20] sm:$0xff]
    %v55 = vld [vmem:[#allocation2 + $0x28] sm:$0xff]
    %v56 = vld [vmem:[#allocation2 + $0x30] sm:$0xff]
    %v57 = vld [vmem:[#allocation2 + $0x38] sm:$0xff]
    %v58 = vld [vmem:[#allocation2 + $0x40] sm:$0xff]
    %v59 = vld [vmem:[#allocation2 + $0x48] sm:$0xff]
    %v60 = vld [vmem:[#allocation2 + $0x50] sm:$0xff]
    %v61 = vld [vmem:[#allocation2 + $0x58] sm:$0xff]
    %v62 = vld [vmem:[#allocation2 + $0x60] sm:$0xff]
    %v63 = vld [vmem:[#allocation2 + $0x68] sm:$0xff]
    %v64 = vld [vmem:[#allocation2 + $0x70] sm:$0xff]
    %v65 = vld [vmem:[#allocation2 + $0x78] sm:$0xff]
    %66 = vmatpush.msra.mxu0 %v65
    %67 = vmatpush.msra.mxu0 %v64
    %68 = vmatpush.msra.mxu0 %v63
    %69 = vmatpush.msra.mxu0 %v62
    %70 = vmatpush.msra.mxu0 %v61
    %71 = vmatpush.msra.mxu0 %v60
    %72 = vmatpush.msra.mxu0 %v59
    %73 = vmatpush.msra.mxu0 %v58
    %74 = vmatpush.msra.mxu0 %v57
    %75 = vmatpush.msra.mxu0 %v56
    %76 = vmatpush.msra.mxu0 %v55
    %77 = vmatpush.msra.mxu0 %v54
    %78 = vmatpush.msra.mxu0 %v53
    %79 = vmatpush.msra.mxu0 %v52
    %80 = vmatpush.msra.mxu0 %v51
    %81 = vmatpush.msra.mxu0 %v50
    %82 = vmatmul.f32.gmra.mxu0 %v49
    %v83 = vpop.f32.mrf.mxu0
    %v84 = vadd.f32 0.0, %v83
    %85 = vdwg.mxu0
    %v86 = vmax.f32 %v84, 1e-24
    %v87 = vrsqrt.pop %v86
    %v88 = vmul.f32 %v87, %v86
    %v89 = vmul.f32 %v88, %v87
    %v90 = vmul.f32 0.5, %v89
    %v91 = vsub.f32 1.5, %v90
    %v92 = vmul.f32 %v87, %v91
    %vm93 = vweird.f32 %v86
    %vm94 = vweird.f32 %v87
    %vm95 = vmor %vm93, %vm94
    %v96 = vsel %vm95, %v87, %v92
    %v97 = vmul.f32 %v48, %v96
    %v98 = vld [vmem:[%s3] sm:$0xff]
    %v99 = vld [vmem:[%s3 + $0x8] sm:$0xff]
    %v100 = vld [vmem:[%s3 + $0x10] sm:$0xff]
    %v101 = vld [vmem:[%s3 + $0x18] sm:$0xff]
    %v102 = vld [vmem:[%s3 + $0x20] sm:$0xff]
    %v103 = vld [vmem:[%s3 + $0x28] sm:$0xff]
    %v104 = vld [vmem:[%s3 + $0x30] sm:$0xff]
    %v105 = vld [vmem:[%s3 + $0x38] sm:$0xff]
    %v106 = vld [vmem:[%s3 + $0x40] sm:$0xff]
    %v107 = vld [vmem:[%s3 + $0x48] sm:$0xff]
    %v108 = vld [vmem:[%s3 + $0x50] sm:$0xff]
    %v109 = vld [vmem:[%s3 + $0x58] sm:$0xff]
    %v110 = vld [vmem:[%s3 + $0x60] sm:$0xff]
    %v111 = vld [vmem:[%s3 + $0x68] sm:$0xff]
    %v112 = vld [vmem:[%s3 + $0x70] sm:$0xff]
    %v113 = vld [vmem:[%s3 + $0x78] sm:$0xff]
    %v114 = vld [vmem:[%s1] sm:$0x1]
    %v115 = vld [vmem:[%s4] sm:$0xff]
    %v116 = vld [vmem:[%s4 + $0x8] sm:$0xff]
    %v117 = vld [vmem:[%s4 + $0x10] sm:$0xff]
    %v118 = vld [vmem:[%s4 + $0x18] sm:$0xff]
    %vm119 = vcmask 261120
    %v121 = vsel %vm119, %v114, 0
    %123 = vmatpush.msra.mxu0 0.0
    %124 = vmatpush.msra.mxu0 0.0
    %125 = vmatpush.msra.mxu0 0.0
    %126 = vmatpush.msra.mxu0 0.0
    %127 = vmatpush.msra.mxu0 0.0
    %128 = vmatpush.msra.mxu0 0.0
    %129 = vmatpush.msra.mxu0 0.0
    %130 = vmatpush.msra.mxu0 0.0
    %131 = vmatpush.msra.mxu0 0.0
    %132 = vmatpush.msra.mxu0 0.0
    %133 = vmatpush.msra.mxu0 0.0
    %134 = vmatpush.msra.mxu0 0.0
    %135 = vmatpush.msra.mxu0 %v118
    %136 = vmatpush.msra.mxu0 %v117
    %137 = vmatpush.msra.mxu0 %v116
    %138 = vmatpush.msra.mxu0 %v115
    %139 = vmatmul.f32.gmra.mxu0 %v121
    %v140 = vpop.f32.mrf.mxu0
    %v141 = vadd.f32 0.0, %v140
    %142 = vdwg.mxu0
    %143 = vmatpush.msra.mxu0 %v113
    %144 = vmatpush.msra.mxu0 %v112
    %145 = vmatpush.msra.mxu0 %v111
    %146 = vmatpush.msra.mxu0 %v110
    %147 = vmatpush.msra.mxu0 %v109
    %148 = vmatpush.msra.mxu0 %v108
    %149 = vmatpush.msra.mxu0 %v107
    %150 = vmatpush.msra.mxu0 %v106
    %151 = vmatpush.msra.mxu0 %v105
    %152 = vmatpush.msra.mxu0 %v104
    %153 = vmatpush.msra.mxu0 %v103
    %154 = vmatpush.msra.mxu0 %v102
    %155 = vmatpush.msra.mxu0 %v101
    %156 = vmatpush.msra.mxu0 %v100
    %157 = vmatpush.msra.mxu0 %v99
    %158 = vmatpush.msra.mxu0 %v98
    %159 = vmatmul.f32.gmra.mxu0 %v97
    %v160 = vpop.f32.mrf.mxu0
    %v161 = vadd.f32 %v141, %v160
    %162 = vdwg.mxu0
    %v163 = vld [vmem:[%s5] sm:$0x1]
    %v164 = vadd.f32 %v161, %v163
    %v165 = vld [vmem:[%s5 + $0x1] sm:$0x1]
    %v166 = vld [vmem:[%s5 + $0x2] sm:$0x1]
    %vm167 = vcmask 253952
    %v168 = vsel %vm167, %v164, 0.0
    %169 = vadd.xlane.f32.xlu0 %v168
    %v170 = vpop.xlane.xlu0 %169
    %v171 = vmul.f32 %v164, %v164
    %v172 = vsel %vm167, %v171, 0.0
    %173 = vadd.xlane.f32.xlu0 %v172
    %v174 = vpop.xlane.xlu0 %173
    %v175 = vmul.f32 %v170, 0.03125
    %v176 = vmul.f32 %v174, 0.03125
    %v177 = vmul.f32 %v175, %v175
    %v178 = vsub.f32 %v176, %v177
    %v179 = vsub.f32 %v164, %v175
    %v180 = vadd.f32 %v178, 1e-05
    %v181 = vrsqrt.pop %v180
    %v182 = vmul.f32 %v181, %v180
    %v183 = vmul.f32 %v182, %v181
    %v184 = vmul.f32 0.5, %v183
    %v185 = vsub.f32 1.5, %v184
    %v186 = vmul.f32 %v181, %v185
    %vm187 = vweird.f32 %v180
    %vm188 = vweird.f32 %v181
    %vm189 = vmor %vm187, %vm188
    %v190 = vsel %vm189, %v181, %v186
    %v191 = vmul.f32 %v179, %v190
    %v192 = vmul.f32 %v191, %v165
    %v193 = vadd.f32 %v192, %v166
    %v194 = vmax.f32 %v193, 0.0
    %v195 = vld [vmem:[%s6] sm:$0xff]
    %v196 = vld [vmem:[%s6 + $0x8] sm:$0xff]
    %v197 = vld [vmem:[%s6 + $0x10] sm:$0xff]
    %v198 = vld [vmem:[%s6 + $0x18] sm:$0xff]
    %v199 = vld [vmem:[%s5 + $0x3] sm:$0x1]
    %v201 = vsel %vm119, %v194, 0
    %203 = vmatpush.msra.mxu0 0.0
    %204 = vmatpush.msra.mxu0 0.0
    %205 = vmatpush.msra.mxu0 0.0
    %206 = vmatpush.msra.mxu0 0.0
    %207 = vmatpush.msra.mxu0 0.0
    %208 = vmatpush.msra.mxu0 0.0
    %209 = vmatpush.msra.mxu0 0.0
    %210 = vmatpush.msra.mxu0 0.0
    %211 = vmatpush.msra.mxu0 0.0
    %212 = vmatpush.msra.mxu0 0.0
    %213 = vmatpush.msra.mxu0 0.0
    %214 = vmatpush.msra.mxu0 0.0
    %215 = vmatpush.msra.mxu0 %v198
    %216 = vmatpush.msra.mxu0 %v197
    %217 = vmatpush.msra.mxu0 %v196
    %218 = vmatpush.msra.mxu0 %v195
    %219 = vmatmul.f32.gmra.mxu0 %v201
    %v220 = vpop.f32.mrf.mxu0
    %v221 = vadd.f32 %v199, %v220
    %222 = vdwg.mxu0
    %v223 = vld [vmem:[%s5 + $0x4] sm:$0x1]
    %v224 = vld [vmem:[%s5 + $0x5] sm:$0x1]
    %v225 = vsel %vm167, %v221, 0.0
    %226 = vadd.xlane.f32.xlu0 %v225
    %v227 = vpop.xlane.xlu0 %226
    %v228 = vmul.f32 %v221, %v221
    %v229 = vsel %vm167, %v228, 0.0
    %230 = vadd.xlane.f32.xlu0 %v229
    %v231 = vpop.xlane.xlu0 %230
    %v232 = vmul.f32 %v227, 0.03125
    %v233 = vmul.f32 %v231, 0.03125
    %v234 = vmul.f32 %v232, %v232
    %v235 = vsub.f32 %v233, %v234
    %v236 = vsub.f32 %v221, %v232
    %v237 = vadd.f32 %v235, 1e-05
    %v238 = vrsqrt.pop %v237
    %v239 = vmul.f32 %v238, %v237
    %v240 = vmul.f32 %v239, %v238
    %v241 = vmul.f32 0.5, %v240
    %v242 = vsub.f32 1.5, %v241
    %v243 = vmul.f32 %v238, %v242
    %vm244 = vweird.f32 %v237
    %vm245 = vweird.f32 %v238
    %vm246 = vmor %vm244, %vm245
    %v247 = vsel %vm246, %v238, %v243
    %v248 = vmul.f32 %v236, %v247
    %v249 = vmul.f32 %v248, %v223
    %v250 = vadd.f32 %v249, %v224
    %v251 = vmax.f32 %v250, 0.0
    %v252 = vld [vmem:[%s7] sm:$0xff]
    %v253 = vld [vmem:[%s7 + $0x8] sm:$0xff]
    %v254 = vld [vmem:[%s7 + $0x10] sm:$0xff]
    %v255 = vld [vmem:[%s7 + $0x18] sm:$0xff]
    %v256 = vld [vmem:[%s8] sm:$0x1]
    %v258 = vsel %vm119, %v251, 0
    %260 = vmatpush.msra.mxu0 0.0
    %261 = vmatpush.msra.mxu0 0.0
    %262 = vmatpush.msra.mxu0 0.0
    %263 = vmatpush.msra.mxu0 0.0
    %264 = vmatpush.msra.mxu0 0.0
    %265 = vmatpush.msra.mxu0 0.0
    %266 = vmatpush.msra.mxu0 0.0
    %267 = vmatpush.msra.mxu0 0.0
    %268 = vmatpush.msra.mxu0 0.0
    %269 = vmatpush.msra.mxu0 0.0
    %270 = vmatpush.msra.mxu0 0.0
    %271 = vmatpush.msra.mxu0 0.0
    %272 = vmatpush.msra.mxu0 %v255
    %273 = vmatpush.msra.mxu0 %v254
    %274 = vmatpush.msra.mxu0 %v253
    %275 = vmatpush.msra.mxu0 %v252
    %276 = vmatmul.f32.gmra.mxu0 %v258
    %v277 = vpop.f32.mrf.mxu0
    %v278 = vadd.f32 %v256, %v277
    %279 = vdwg.mxu0
    %v280 = vld [vmem:[%s8 + $0x2] sm:$0x1]
    %v281 = vld [vmem:[%s8 + $0x1] sm:$0x1]
    %v282 = vxor.u32 %v278, 2147483648
    %v283 = vmul.f32 %v282, 1.442695
    %v284 = vpow.pop %v283
    %v285 = vadd.f32 %v284, 1.0
    %v286 = vrcp.pop %v285
    %v287 = vmul.f32 %v285, %v286
    %v288 = vsub.f32 1.0, %v287
    %v289 = vmul.f32 %v286, %v288
    %v290 = vadd.f32 %v286, %v289
    %vm291 = vweird.f32 %v285
    %vm292 = vweird.f32 %v286
    %vm293 = vmor %vm291, %vm292
    %v294 = vsel %vm293, %v286, %v290
    %v295 = vand.u32 2147483647, %v285
    %vm296 = vcmp.eq.f32.partialorder %v295, 8.507059e+37
    %v297 = vand.u32 %v285, 2147483648
    %v298 = vor.u32 1.1754944e-38, %v297
    %v299 = vsel %vm296, %v298, %v294
    %v300 = vmul.f32 1.0, %v299
    %v301 = vmul.f32 %v281, %v300
    %v302 = vadd.f32 %v280, %v301
    %303 = vst [vmem:[%s9] sm:$0x1] %v302
    // Predicated region
    $region42: #{hypernet_forward_batched.1} parent=1 // pred_check
      _
    $region43: #{hypernet_forward_batched.1} parent=1 // pred_check_branch
      %305 = sbr.rel (0) target = $region45
    $region44: #{hypernet_forward_batched.1} parent=1 // pred_region
      _
    $region45: #{hypernet_forward_batched.1} parent=1 // pred_fallthru
      _
    // Predicated region
    $region46: #{hypernet_forward_batched.1} parent=1 // pred_check
      _
    $region47: #{hypernet_forward_batched.1} parent=1 // pred_check_branch
      %307 = sbr.rel (0) target = $region49
    $region48: #{hypernet_forward_batched.1} parent=1 // pred_region
      _
    $region49: #{hypernet_forward_batched.1} parent=1 // pred_fallthru
      _
    %308 = vsyncpa [#allocation3], 1

</llo_original>
